<compile_context>
chip_gen: v7x
topology: tpu7x:2x2x1
jax: 0.10.0
libtpu: 0.0.40
codegen_flags: <defaults>
</compile_context>

<pallas_src>
import jax
import jax.numpy as jnp
import numpy as np
from jax import lax
from jax.experimental import pallas as pl
from jax.experimental.pallas import tpu as pltpu

D_MODEL = 32          # config.d_model   (small synthetic size)
HIDDEN = 32           # config.hidden_dim
H2 = HIDDEN // 2
LN_EPS = 1e-5         # nn.LayerNorm default eps


def _silu(x):
    # exp on the EUP + approximate reciprocal (EUP slot, off the VALU)
    return x * pl.reciprocal(1.0 + jnp.exp(-x), approx=True)


def _layernorm(x, gamma, beta):
    # single-pass variance: E[x^2] - mean^2 (halves the cross-lane reductions)
    mu = jnp.mean(x, axis=-1, keepdims=True)
    var = jnp.maximum(jnp.mean(x * x, axis=-1, keepdims=True) - mu * mu, 0.0)
    return (x - mu) * lax.rsqrt(var + LN_EPS) * gamma + beta


def spo2_decoder_kernel(x_ref, w_ref, v_ref, out_ref):
    sd = x_ref.shape[1]                                   # S * D_MODEL (static)
    x = x_ref[...]                                        # (TB, S*D) lane-dense

    # fused seq-mean + Linear(D, H): weight rows 0:sd hold S copies of (W1 / S),
    # so x_flat @ w1_rep == mean_s(x) @ W1 exactly.
    w1 = w_ref[0:sd, 0:HIDDEN]
    h = jnp.dot(x, w1, preferred_element_type=jnp.float32)
    h = h + v_ref[0:1, 0:HIDDEN]
    h = _silu(h)
    h = _layernorm(h, v_ref[1:2, 0:HIDDEN], v_ref[2:3, 0:HIDDEN])
    # TODO(synk): dropout is identity here (eval-mode semantics)

    # feature_net block 2: Linear(H, H//2) -> SiLU -> LayerNorm(H//2) -> Dropout
    w2 = w_ref[sd:sd + HIDDEN, 0:H2]
    h = jnp.dot(h, w2, preferred_element_type=jnp.float32)
    h = h + v_ref[3:4, 0:H2]
    h = _silu(h)
    h = _layernorm(h, v_ref[4:5, 0:H2], v_ref[5:6, 0:H2])

    # fused heads: one (H2, 2) matmul; col 0 = regression, col 1 = uncertainty
    wh = w_ref[sd + HIDDEN:sd + HIDDEN + H2, 0:2]
    z = jnp.dot(h, wh, preferred_element_type=jnp.float32)
    z = z + v_ref[6:7, 0:2]                               # (TB, 2)

    # spo2 = 90 + 10*sigmoid(.)  (exact reciprocal for the head)
    spo2_all = 90.0 + 10.0 / (1.0 + jnp.exp(-z))
    # softplus(., beta=1, threshold=20)
    sp_all = jnp.where(z > 20.0, z, jnp.log1p(jnp.exp(jnp.minimum(z, 20.0))))
    col = lax.broadcasted_iota(jnp.int32, z.shape, 1)
    out_ref[...] = jnp.where(col == 0, spo2_all, sp_all)  # single dense store


def pack_params(params, seq_len):
    """Pack parameters into 2 slabs. Folds the 1/S seq-mean into W1."""
    S = int(seq_len)
    sd = S * D_MODEL

    # fused mean + Linear1: S vertically-stacked copies of (W1 / S)
    w1_rep = jnp.tile(params["w1"] * (1.0 / S), (S, 1))                 # (S*D, H)
    wh = jnp.concatenate([params["wr"], params["wu"]], axis=1)          # (H2, 2)

    w_rows = sd + HIDDEN + H2
    wslab = jnp.zeros((w_rows, HIDDEN), jnp.float32)
    wslab = wslab.at[0:sd, 0:HIDDEN].set(w1_rep)
    wslab = wslab.at[sd:sd + HIDDEN, 0:H2].set(params["w2"])
    wslab = wslab.at[sd + HIDDEN:sd + HIDDEN + H2, 0:2].set(wh)

    # (8, 128) bias/LN slab: one vector per sublane row, lane-0 aligned
    vslab = jnp.zeros((8, 128), jnp.float32)
    rows = [params["b1"], params["g1"], params["be1"],
            params["b2"], params["g2"], params["be2"],
            jnp.concatenate([params["br"], params["bu"]], axis=1)]
    for r, vec in enumerate(rows):
        flat = vec.reshape(-1)
        vslab = vslab.at[r, 0:flat.shape[0]].set(flat)
    return wslab, vslab


def _vmem_capacity_bytes():
    try:
        cap = getattr(pltpu.get_tpu_info(), "vmem_capacity_bytes", None)
        if cap:
            return int(cap)
    except Exception:
        pass
    return 64 << 20   # conservative fallback (v7x per-TC VMEM)


def spo2_decoder(features, wslab, vslab, *, tb=None):
    """features: (B, S, D_MODEL) or (B, D_MODEL) f32 -> (spo2 (B,), uncertainty (B,))."""
    if features.ndim == 2:
        features = features[:, None, :]
    B, S, D = features.shape
    assert D == D_MODEL
    sd = S * D
    assert wslab.shape[0] == sd + HIDDEN + H2, "wslab was packed for a different seq_len"

    x2d = features.reshape(B, sd)                         # lane-dense minor dim

    # ---- batch tile sizing from PADDED VMEM bytes, per TPU generation -------
    vmem_cap = _vmem_capacity_bytes()
    sd_pad = ((sd + 127) // 128) * 128                    # lane padding in VMEM
    row_bytes = sd_pad * 4
    per_buf_budget = vmem_cap // 8                        # ~8 MiB on v7x, ~16 MiB on v5e/v6e
    if tb is None:
        rows = max(8, ((per_buf_budget // row_bytes) // 8) * 8)
        if B <= 16:
            tb = min(B, rows)                             # too small to split usefully
        else:
            # guarantee >= 2 tiles: feeds v7x's 2nd TC and overlaps DMA/compute
            half = ((pl.cdiv(B, 2) + 7) // 8) * 8
            tb = min(rows, half)
    tb = max(1, min(tb, B))
    if tb < B:
        tb = max(8, (tb // 8) * 8)                        # 8-row alignment for tiled blocks
    grid = (pl.cdiv(B, tb),)

    # explicit scoped-VMEM limit: double-buffered features + params + headroom
    vmem_limit = int(min(vmem_cap, 2 * tb * row_bytes + (8 << 20)))

    out = pl.pallas_call(
        spo2_decoder_kernel,
        out_shape=jax.ShapeDtypeStruct((B, 2), jnp.float32),
        grid_spec=pltpu.PrefetchScalarGridSpec(
            num_scalar_prefetch=0,
            grid=grid,
            in_specs=[
                pl.BlockSpec((tb, sd), lambda i: (i, 0)),       # pipelined, lane-dense features
                pl.BlockSpec(wslab.shape, lambda i: (0, 0)),    # weight slab (resident)
                pl.BlockSpec(vslab.shape, lambda i: (0, 0)),    # bias/LN slab (resident)
            ],
            out_specs=pl.BlockSpec((tb, 2), lambda i: (i, 0)),
        ),
        compiler_params=pltpu.CompilerParams(
            dimension_semantics=("parallel",),                  # megacore-shard batch tiles
            vmem_limit_bytes=vmem_limit),
    )(x2d, wslab, vslab)

    # torch .squeeze(-1) on each head
    return out[:, 0], out[:, 1]


def init_params(key):
    """Deterministic synthetic init mimicking PyTorch Linear default ranges."""
    keys = jax.random.split(key, 8)

    def lin(kw, kb, fan_in, fan_out):
        bound = 1.0 / (fan_in ** 0.5)
        w = jax.random.uniform(kw, (fan_in, fan_out), jnp.float32, -bound, bound)
        b = jax.random.uniform(kb, (1, fan_out), jnp.float32, -bound, bound)
        return w, b

    w1, b1 = lin(keys[0], keys[1], D_MODEL, HIDDEN)
    w2, b2 = lin(keys[2], keys[3], HIDDEN, H2)
    wr, br = lin(keys[4], keys[5], H2, 1)
    wu, bu = lin(keys[6], keys[7], H2, 1)
    return dict(
        w1=w1, b1=b1,
        g1=jnp.ones((1, HIDDEN), jnp.float32), be1=jnp.zeros((1, HIDDEN), jnp.float32),
        w2=w2, b2=b2,
        g2=jnp.ones((1, H2), jnp.float32), be2=jnp.zeros((1, H2), jnp.float32),
        wr=wr, br=br, wu=wu, bu=bu,
    )


def reference(features, params):
    """Pure-JAX forward matching the PyTorch module (eval mode)."""
    x = features.mean(axis=1) if features.ndim == 3 else features

    def ln(v, g, b):
        mu = v.mean(-1, keepdims=True)
        var = ((v - mu) ** 2).mean(-1, keepdims=True)
        return (v - mu) / jnp.sqrt(var + LN_EPS) * g + b

    h = x @ params["w1"] + params["b1"]
    h = h * jax.nn.sigmoid(h)
    h = ln(h, params["g1"], params["be1"])
    h = h @ params["w2"] + params["b2"]
    h = h * jax.nn.sigmoid(h)
    h = ln(h, params["g2"], params["be2"])
    spo2 = 90.0 + 10.0 * jax.nn.sigmoid((h @ params["wr"] + params["br"])[:, 0])
    unc = jax.nn.softplus((h @ params["wu"] + params["bu"])[:, 0])
    return spo2, unc


if __name__ == "__main__":
    key = jax.random.PRNGKey(0)
    pkey, xkey = jax.random.split(key)
    params = init_params(pkey)

    # small shapes: batch=2, seq=8, d_model=32
    B, S = 2, 8
    x = jax.random.normal(xkey, (B, S, D_MODEL), jnp.float32)

    wslab, vslab = pack_params(params, seq_len=S)   # one-time packing (model load)

    spo2, uncertainty = spo2_decoder(x, wslab, vslab)
    jax.block_until_ready((spo2, uncertainty))

    assert spo2.shape == (B,) and uncertainty.shape == (B,)

    # validate against a pure-JAX reference (tolerance covers the EUP-approx SiLU)
    spo2_ref, unc_ref = reference(x, params)
    np.testing.assert_allclose(np.asarray(spo2), np.asarray(spo2_ref), rtol=2e-2, atol=1e-1)
    np.testing.assert_allclose(np.asarray(uncertainty), np.asarray(unc_ref), rtol=2e-2, atol=5e-2)

    print("KERNEL_OK")
</pallas_src>

<mosaic_0001>
module attributes {stable_mosaic.version = 11 : i64} {
  func.func @spo2_decoder_kernel(%arg0: i32, %arg1: memref<2x256xf32, #tpu.memory_space<vmem>>, %arg2: memref<304x32xf32, #tpu.memory_space<vmem>>, %arg3: memref<8x128xf32, #tpu.memory_space<vmem>>, %arg4: memref<2x2xf32, #tpu.memory_space<vmem>>) attributes {dimension_semantics = [#tpu.dimension_semantics<parallel>], iteration_bounds = array<i64: 1>, scalar_prefetch = 0 : i64, scratch_operands = 0 : i64, tpu.core_type = #tpu.core_type<tc>, window_params = [{transform_indices = @transform_0, window_bounds = array<i64: 2, 256>}, {pipeline_mode = #tpu.pipeline_mode<synchronous>, transform_indices = @transform_1, window_bounds = array<i64: 304, 32>}, {pipeline_mode = #tpu.pipeline_mode<synchronous>, transform_indices = @transform_2, window_bounds = array<i64: 8, 128>}, {transform_indices = @transform_3, window_bounds = array<i64: 2, 2>}]} {
    %c0 = arith.constant 0 : index
    %c0_0 = arith.constant 0 : index
    %0 = vector.load %arg1[%c0, %c0_0] : memref<2x256xf32, #tpu.memory_space<vmem>>, vector<2x256xf32>
    %c0_1 = arith.constant 0 : index
    %c0_2 = arith.constant 0 : index
    %1 = vector.load %arg2[%c0_1, %c0_2] : memref<304x32xf32, #tpu.memory_space<vmem>>, vector<256x32xf32>
    %cst = arith.constant dense<0.000000e+00> : vector<2x32xf32>
    %2 = tpu.matmul %0, %1, %cst {dimension_numbers = #tpu.dot_dimension_numbers<[1], [0], [0], [1], [0, 0, 1, 1], [], []>} : vector<2x256xf32>, vector<256x32xf32>, vector<2x32xf32> -> vector<2x32xf32>
    %c0_3 = arith.constant 0 : index
    %c0_4 = arith.constant 0 : index
    %3 = vector.load %arg3[%c0_3, %c0_4] : memref<8x128xf32, #tpu.memory_space<vmem>>, vector<1x32xf32>
    %4 = vector.broadcast %3 : vector<1x32xf32> to vector<2x32xf32>
    %5 = arith.addf %2, %4 : vector<2x32xf32>
    %cst_5 = arith.constant 0.000000e+00 : f32
    %6 = vector.broadcast %cst_5 : f32 to vector<2x32xf32>
    %7 = arith.subf %6, %5 : vector<2x32xf32>
    %8 = math.exp %7 : vector<2x32xf32>
    %cst_6 = arith.constant 1.000000e+00 : f32
    %9 = vector.broadcast %cst_6 : f32 to vector<2x32xf32>
    %10 = arith.addf %9, %8 : vector<2x32xf32>
    %11 = tpu.reciprocal %10 {approx = true} : vector<2x32xf32> -> vector<2x32xf32>
    %12 = arith.mulf %5, %11 : vector<2x32xf32>
    %c1 = arith.constant 1 : index
    %c0_7 = arith.constant 0 : index
    %13 = vector.load %arg3[%c1, %c0_7] : memref<8x128xf32, #tpu.memory_space<vmem>>, vector<1x32xf32>
    %c2 = arith.constant 2 : index
    %c0_8 = arith.constant 0 : index
    %14 = vector.load %arg3[%c2, %c0_8] : memref<8x128xf32, #tpu.memory_space<vmem>>, vector<1x32xf32>
    %cst_9 = arith.constant dense<0.000000e+00> : vector<2xf32>
    %15 = vector.multi_reduction <add>, %12, %cst_9 [1] : vector<2x32xf32> to vector<2xf32>
    %16 = vector.shape_cast %15 : vector<2xf32> to vector<2x1xf32>
    %cst_10 = arith.constant 3.200000e+01 : f32
    %17 = vector.broadcast %cst_10 : f32 to vector<2x1xf32>
    %18 = arith.divf %16, %17 : vector<2x1xf32>
    %19 = arith.mulf %12, %12 : vector<2x32xf32>
    %cst_11 = arith.constant dense<0.000000e+00> : vector<2xf32>
    %20 = vector.multi_reduction <add>, %19, %cst_11 [1] : vector<2x32xf32> to vector<2xf32>
    %21 = vector.shape_cast %20 : vector<2xf32> to vector<2x1xf32>
    %cst_12 = arith.constant 3.200000e+01 : f32
    %22 = vector.broadcast %cst_12 : f32 to vector<2x1xf32>
    %23 = arith.divf %21, %22 : vector<2x1xf32>
    %24 = arith.mulf %18, %18 : vector<2x1xf32>
    %25 = arith.subf %23, %24 : vector<2x1xf32>
    %cst_13 = arith.constant 0.000000e+00 : f32
    %26 = vector.broadcast %cst_13 : f32 to vector<2x1xf32>
    %27 = arith.maximumf %25, %26 : vector<2x1xf32>
    %28 = vector.broadcast %18 : vector<2x1xf32> to vector<2x32xf32>
    %29 = arith.subf %12, %28 : vector<2x32xf32>
    %cst_14 = arith.constant 9.99999974E-6 : f32
    %30 = vector.broadcast %cst_14 : f32 to vector<2x1xf32>
    %31 = arith.addf %27, %30 : vector<2x1xf32>
    %32 = math.rsqrt %31 : vector<2x1xf32>
    %33 = vector.broadcast %32 : vector<2x1xf32> to vector<2x32xf32>
    %34 = arith.mulf %29, %33 : vector<2x32xf32>
    %35 = vector.broadcast %13 : vector<1x32xf32> to vector<2x32xf32>
    %36 = arith.mulf %34, %35 : vector<2x32xf32>
    %37 = vector.broadcast %14 : vector<1x32xf32> to vector<2x32xf32>
    %38 = arith.addf %36, %37 : vector<2x32xf32>
    %c256 = arith.constant 256 : index
    %c0_15 = arith.constant 0 : index
    %39 = vector.load %arg2[%c256, %c0_15] : memref<304x32xf32, #tpu.memory_space<vmem>>, vector<32x16xf32>
    %cst_16 = arith.constant dense<0.000000e+00> : vector<2x16xf32>
    %40 = tpu.matmul %38, %39, %cst_16 {dimension_numbers = #tpu.dot_dimension_numbers<[1], [0], [0], [1], [0, 0, 1, 1], [], []>} : vector<2x32xf32>, vector<32x16xf32>, vector<2x16xf32> -> vector<2x16xf32>
    %c3 = arith.constant 3 : index
    %c0_17 = arith.constant 0 : index
    %41 = vector.load %arg3[%c3, %c0_17] : memref<8x128xf32, #tpu.memory_space<vmem>>, vector<1x16xf32>
    %42 = vector.broadcast %41 : vector<1x16xf32> to vector<2x16xf32>
    %43 = arith.addf %40, %42 : vector<2x16xf32>
    %cst_18 = arith.constant 0.000000e+00 : f32
    %44 = vector.broadcast %cst_18 : f32 to vector<2x16xf32>
    %45 = arith.subf %44, %43 : vector<2x16xf32>
    %46 = math.exp %45 : vector<2x16xf32>
    %cst_19 = arith.constant 1.000000e+00 : f32
    %47 = vector.broadcast %cst_19 : f32 to vector<2x16xf32>
    %48 = arith.addf %47, %46 : vector<2x16xf32>
    %49 = tpu.reciprocal %48 {approx = true} : vector<2x16xf32> -> vector<2x16xf32>
    %50 = arith.mulf %43, %49 : vector<2x16xf32>
    %c4 = arith.constant 4 : index
    %c0_20 = arith.constant 0 : index
    %51 = vector.load %arg3[%c4, %c0_20] : memref<8x128xf32, #tpu.memory_space<vmem>>, vector<1x16xf32>
    %c5 = arith.constant 5 : index
    %c0_21 = arith.constant 0 : index
    %52 = vector.load %arg3[%c5, %c0_21] : memref<8x128xf32, #tpu.memory_space<vmem>>, vector<1x16xf32>
    %cst_22 = arith.constant dense<0.000000e+00> : vector<2xf32>
    %53 = vector.multi_reduction <add>, %50, %cst_22 [1] : vector<2x16xf32> to vector<2xf32>
    %54 = vector.shape_cast %53 : vector<2xf32> to vector<2x1xf32>
    %cst_23 = arith.constant 1.600000e+01 : f32
    %55 = vector.broadcast %cst_23 : f32 to vector<2x1xf32>
    %56 = arith.divf %54, %55 : vector<2x1xf32>
    %57 = arith.mulf %50, %50 : vector<2x16xf32>
    %cst_24 = arith.constant dense<0.000000e+00> : vector<2xf32>
    %58 = vector.multi_reduction <add>, %57, %cst_24 [1] : vector<2x16xf32> to vector<2xf32>
    %59 = vector.shape_cast %58 : vector<2xf32> to vector<2x1xf32>
    %cst_25 = arith.constant 1.600000e+01 : f32
    %60 = vector.broadcast %cst_25 : f32 to vector<2x1xf32>
    %61 = arith.divf %59, %60 : vector<2x1xf32>
    %62 = arith.mulf %56, %56 : vector<2x1xf32>
    %63 = arith.subf %61, %62 : vector<2x1xf32>
    %cst_26 = arith.constant 0.000000e+00 : f32
    %64 = vector.broadcast %cst_26 : f32 to vector<2x1xf32>
    %65 = arith.maximumf %63, %64 : vector<2x1xf32>
    %66 = vector.broadcast %56 : vector<2x1xf32> to vector<2x16xf32>
    %67 = arith.subf %50, %66 : vector<2x16xf32>
    %cst_27 = arith.constant 9.99999974E-6 : f32
    %68 = vector.broadcast %cst_27 : f32 to vector<2x1xf32>
    %69 = arith.addf %65, %68 : vector<2x1xf32>
    %70 = math.rsqrt %69 : vector<2x1xf32>
    %71 = vector.broadcast %70 : vector<2x1xf32> to vector<2x16xf32>
    %72 = arith.mulf %67, %71 : vector<2x16xf32>
    %73 = vector.broadcast %51 : vector<1x16xf32> to vector<2x16xf32>
    %74 = arith.mulf %72, %73 : vector<2x16xf32>
    %75 = vector.broadcast %52 : vector<1x16xf32> to vector<2x16xf32>
    %76 = arith.addf %74, %75 : vector<2x16xf32>
    %c288 = arith.constant 288 : index
    %c0_28 = arith.constant 0 : index
    %77 = vector.load %arg2[%c288, %c0_28] : memref<304x32xf32, #tpu.memory_space<vmem>>, vector<16x2xf32>
    %cst_29 = arith.constant dense<0.000000e+00> : vector<2x2xf32>
    %78 = tpu.matmul %76, %77, %cst_29 {dimension_numbers = #tpu.dot_dimension_numbers<[1], [0], [0], [1], [0, 0, 1, 1], [], []>} : vector<2x16xf32>, vector<16x2xf32>, vector<2x2xf32> -> vector<2x2xf32>
    %c6 = arith.constant 6 : index
    %c0_30 = arith.constant 0 : index
    %79 = vector.load %arg3[%c6, %c0_30] : memref<8x128xf32, #tpu.memory_space<vmem>>, vector<1x2xf32>
    %80 = vector.broadcast %79 : vector<1x2xf32> to vector<2x2xf32>
    %81 = arith.addf %78, %80 : vector<2x2xf32>
    %cst_31 = arith.constant 0.000000e+00 : f32
    %82 = vector.broadcast %cst_31 : f32 to vector<2x2xf32>
    %83 = arith.subf %82, %81 : vector<2x2xf32>
    %84 = math.exp %83 : vector<2x2xf32>
    %cst_32 = arith.constant 1.000000e+00 : f32
    %85 = vector.broadcast %cst_32 : f32 to vector<2x2xf32>
    %86 = arith.addf %85, %84 : vector<2x2xf32>
    %cst_33 = arith.constant 1.000000e+01 : f32
    %87 = vector.broadcast %cst_33 : f32 to vector<2x2xf32>
    %88 = arith.divf %87, %86 : vector<2x2xf32>
    %cst_34 = arith.constant 9.000000e+01 : f32
    %89 = vector.broadcast %cst_34 : f32 to vector<2x2xf32>
    %90 = arith.addf %89, %88 : vector<2x2xf32>
    %cst_35 = arith.constant 2.000000e+01 : f32
    %91 = vector.broadcast %cst_35 : f32 to vector<2x2xf32>
    %92 = arith.cmpf ogt, %81, %91 : vector<2x2xf32>
    %cst_36 = arith.constant 2.000000e+01 : f32
    %93 = vector.broadcast %cst_36 : f32 to vector<2x2xf32>
    %94 = arith.minimumf %81, %93 : vector<2x2xf32>
    %95 = math.exp %94 : vector<2x2xf32>
    %96 = math.log1p %95 : vector<2x2xf32>
    %97 = arith.select %92, %81, %96 : vector<2x2xi1>, vector<2x2xf32>
    %98 = tpu.iota {dimensions = array<i32: 1>} : vector<2x2xi32>
    %c0_i32 = arith.constant 0 : i32
    %99 = vector.broadcast %c0_i32 : i32 to vector<2x2xi32>
    %100 = arith.cmpi eq, %98, %99 : vector<2x2xi32>
    %101 = arith.select %100, %90, %97 : vector<2x2xi1>, vector<2x2xf32>
    %c0_37 = arith.constant 0 : index
    %c0_38 = arith.constant 0 : index
    %102 = vector.load %arg4[%c0_37, %c0_38] : memref<2x2xf32, #tpu.memory_space<vmem>>, vector<2x2xf32>
    tpu.vector_store %arg4[%c0_37, %c0_38], %101 {strides = array<i32>} : memref<2x2xf32, #tpu.memory_space<vmem>>, vector<2x2xf32>,
    return
  }
  func.func @transform_0(%arg0: i32) -> (i32, i32) {
    %c0_i32 = arith.constant 0 : i32
    %c0_i32_0 = arith.constant 0 : i32
    return %arg0, %c0_i32 : i32, i32
  }
  func.func @transform_1(%arg0: i32) -> (i32, i32) {
    %c0_i32 = arith.constant 0 : i32
    %c0_i32_0 = arith.constant 0 : i32
    %c0_i32_1 = arith.constant 0 : i32
    return %c0_i32, %c0_i32_0 : i32, i32
  }
  func.func @transform_2(%arg0: i32) -> (i32, i32) {
    %c0_i32 = arith.constant 0 : i32
    %c0_i32_0 = arith.constant 0 : i32
    %c0_i32_1 = arith.constant 0 : i32
    return %c0_i32, %c0_i32_0 : i32, i32
  }
  func.func @transform_3(%arg0: i32) -> (i32, i32) {
    %c0_i32 = arith.constant 0 : i32
    %c0_i32_0 = arith.constant 0 : i32
    return %arg0, %c0_i32 : i32, i32
  }
}

</mosaic_0001>

<llo_original>
// kernel: tpu_custom_call.1
$region0: #{tpu_custom_call.1}
  #allocation0 [shape = 'u32[]', space=smem, size = 0x4, offset = 0x4, fixed_abs, tag = 'smem constant byte address 0x4 - core index']
  #allocation1 [shape = 'u32[144,128]{1,0:T(1,128)}', space=vmem, size = 0x12000, scoped, tag = 'internal scratch']
  %s0 = inlined_call_operand.vmem [shape: f32[2,256], index: 0, kind: input, shape index: {}]
  %s1 = inlined_call_operand.vmem [shape: f32[304,32], index: 1, kind: input, shape index: {}]
  %s2 = inlined_call_operand.vmem [shape: f32[8,128], index: 2, kind: input, shape index: {}]
  %s3 = inlined_call_operand.hbm [shape: f32[2,2], index: 3, kind: output, shape index: {}]
  %s4 = sld [smem:[#allocation0]]
  $region22: #{tpu_custom_call.1} parent=0
    _
  %s6 = ssub.s32 1, %s4
  %s7 = scalar_select 0, %s6, %s4
  $region1: #{tpu_custom_call.1} parent=0
    #allocation2 [shape = 'u8[1024]{0}', space=vmem, size = 0x400, scoped, tag = 'output window, operand 0, single buffered']
    #allocation3 [shape = 's32[1]{0}', space=sflag, size = 0x4, scoped, tag = 'scoped memory for tpu_custom_call.1']
    %8 = vsyncpa [#allocation3], 0
    // Predicated region
    $region2: #{tpu_custom_call.1} parent=1 // pred_check
      _
    $region3: #{tpu_custom_call.1} parent=1 // pred_check_branch
      %10 = sbr.rel (0) target = $region5
    $region4: #{tpu_custom_call.1} parent=1 // pred_region
      _
    $region5: #{tpu_custom_call.1} parent=1 // pred_fallthru
      _
    // Predicated region
    $region6: #{tpu_custom_call.1} parent=1 // pred_check
      _
    $region7: #{tpu_custom_call.1} parent=1 // pred_check_branch
      %12 = sbr.rel (0) target = $region9
    $region8: #{tpu_custom_call.1} parent=1 // pred_region
      _
    $region9: #{tpu_custom_call.1} parent=1 // pred_fallthru
      _
    // Predicated region
    $region10: #{tpu_custom_call.1} parent=1 // pred_check
      _
    $region11: #{tpu_custom_call.1} parent=1 // pred_check_branch
      %14 = sbr.rel (0) target = $region13
    $region12: #{tpu_custom_call.1} parent=1 // pred_region
      _
    $region13: #{tpu_custom_call.1} parent=1 // pred_fallthru
      _
    %v15 = vld [vmem:[%s0] sm:$0xf]
    %v16 = vld [vmem:[%s1] sm:$0xff]
    %v17 = vld [vmem:[%s1 + $0x8] sm:$0xff]
    %v18 = vld [vmem:[%s1 + $0x10] sm:$0xff]
    %v19 = vld [vmem:[%s1 + $0x18] sm:$0xff]
    %v20 = vld [vmem:[%s1 + $0x20] sm:$0xff]
    %v21 = vld [vmem:[%s1 + $0x28] sm:$0xff]
    %v22 = vld [vmem:[%s1 + $0x30] sm:$0xff]
    %v23 = vld [vmem:[%s1 + $0x38] sm:$0xff]
    %v24 = vld [vmem:[%s1 + $0x40] sm:$0xff]
    %v25 = vld [vmem:[%s1 + $0x48] sm:$0xff]
    %v26 = vld [vmem:[%s1 + $0x50] sm:$0xff]
    %v27 = vld [vmem:[%s1 + $0x58] sm:$0xff]
    %v28 = vld [vmem:[%s1 + $0x60] sm:$0xff]
    %v29 = vld [vmem:[%s1 + $0x68] sm:$0xff]
    %v30 = vld [vmem:[%s1 + $0x70] sm:$0xff]
    %v31 = vld [vmem:[%s1 + $0x78] sm:$0xff]
    %v32 = vld [vmem:[%s1 + $0x80] sm:$0xff]
    %v33 = vld [vmem:[%s1 + $0x88] sm:$0xff]
    %v34 = vld [vmem:[%s1 + $0x90] sm:$0xff]
    %v35 = vld [vmem:[%s1 + $0x98] sm:$0xff]
    %v36 = vld [vmem:[%s1 + $0xa0] sm:$0xff]
    %v37 = vld [vmem:[%s1 + $0xa8] sm:$0xff]
    %v38 = vld [vmem:[%s1 + $0xb0] sm:$0xff]
    %v39 = vld [vmem:[%s1 + $0xb8] sm:$0xff]
    %v40 = vld [vmem:[%s1 + $0xc0] sm:$0xff]
    %v41 = vld [vmem:[%s1 + $0xc8] sm:$0xff]
    %v42 = vld [vmem:[%s1 + $0xd0] sm:$0xff]
    %v43 = vld [vmem:[%s1 + $0xd8] sm:$0xff]
    %v44 = vld [vmem:[%s1 + $0xe0] sm:$0xff]
    %v45 = vld [vmem:[%s1 + $0xe8] sm:$0xff]
    %v46 = vld [vmem:[%s1 + $0xf0] sm:$0xff]
    %v47 = vld [vmem:[%s1 + $0xf8] sm:$0xff]
    %v48 = vld [vmem:[%s2] sm:$0x1]
    %v49 = vlaneseq
    %v50 = vshrl.u32 %v49, 7
    %v51 = vsub.s32 0, %v50
    %v52 = vrot.slane %v48, %v51
    %v55 = vunpack.c.l.s4 1983009808
    %v56 = vunpack.c.0.s8 %v55
    %v57 = vlaneseq
    %v58 = vshrl.u32 %v57, 7
    %v59 = vsub.s32 %v56, %v58
    %v60 = vrot.slane %v15, %v59
    %v61 = vcombine.high %v60, %v60
    %64 = vmatprep.subr.mxu0 0.0
    %65 = vmatpush1.msra.mxu0 %v16
    %66 = vmatprep.subr.mxu0 0.0
    %67 = vmatpush1.msra.mxu0 %v17
    %68 = vmatprep.subr.mxu0 0.0
    %69 = vmatpush1.msra.mxu0 %v18
    %70 = vmatprep.subr.mxu0 0.0
    %71 = vmatpush1.msra.mxu0 %v19
    %72 = vmatprep.subr.mxu0 0.0
    %73 = vmatpush1.msra.mxu0 %v20
    %74 = vmatprep.subr.mxu0 0.0
    %75 = vmatpush1.msra.mxu0 %v21
    %76 = vmatprep.subr.mxu0 0.0
    %77 = vmatpush1.msra.mxu0 %v22
    %78 = vmatprep.subr.mxu0 0.0
    %79 = vmatpush1.msra.mxu0 %v23
    %80 = vmatprep.subr.mxu0 0.0
    %81 = vmatpush1.msra.mxu0 %v24
    %82 = vmatprep.subr.mxu0 0.0
    %83 = vmatpush1.msra.mxu0 %v25
    %84 = vmatprep.subr.mxu0 0.0
    %85 = vmatpush1.msra.mxu0 %v26
    %86 = vmatprep.subr.mxu0 0.0
    %87 = vmatpush1.msra.mxu0 %v27
    %88 = vmatprep.subr.mxu0 0.0
    %89 = vmatpush1.msra.mxu0 %v28
    %90 = vmatprep.subr.mxu0 0.0
    %91 = vmatpush1.msra.mxu0 %v29
    %92 = vmatprep.subr.mxu0 0.0
    %93 = vmatpush1.msra.mxu0 %v30
    %94 = vmatprep.subr.mxu0 0.0
    %95 = vmatpush1.msra.mxu0 %v31
    %96 = vmatprep.subr.mxu0 0.0
    %97 = vmatpush1.msra.mxu0 %v32
    %98 = vmatprep.subr.mxu0 0.0
    %99 = vmatpush1.msra.mxu0 %v33
    %100 = vmatprep.subr.mxu0 0.0
    %101 = vmatpush1.msra.mxu0 %v34
    %102 = vmatprep.subr.mxu0 0.0
    %103 = vmatpush1.msra.mxu0 %v35
    %104 = vmatprep.subr.mxu0 0.0
    %105 = vmatpush1.msra.mxu0 %v36
    %106 = vmatprep.subr.mxu0 0.0
    %107 = vmatpush1.msra.mxu0 %v37
    %108 = vmatprep.subr.mxu0 0.0
    %109 = vmatpush1.msra.mxu0 %v38
    %110 = vmatprep.subr.mxu0 0.0
    %111 = vmatpush1.msra.mxu0 %v39
    %112 = vmatprep.subr.mxu0 0.0
    %113 = vmatpush1.msra.mxu0 %v40
    %114 = vmatprep.subr.mxu0 0.0
    %115 = vmatpush1.msra.mxu0 %v41
    %116 = vmatprep.subr.mxu0 0.0
    %117 = vmatpush1.msra.mxu0 %v42
    %118 = vmatprep.subr.mxu0 0.0
    %119 = vmatpush1.msra.mxu0 %v43
    %120 = vmatprep.subr.mxu0 0.0
    %121 = vmatpush1.msra.mxu0 %v44
    %122 = vmatprep.subr.mxu0 0.0
    %123 = vmatpush1.msra.mxu0 %v45
    %124 = vmatprep.subr.mxu0 0.0
    %125 = vmatpush1.msra.mxu0 %v46
    %126 = vmatprep.subr.mxu0 0.0
    %127 = vmatpush1.msra.mxu0 %v47
    %128 = vmatprep.mubr.f32.mxu0 %v61
    %129 = vmatmul.mubr.f32.gmra.mrb[0].mxu0 %v60
    %v130 = vpop.f32.mrb[0].mxu0
    %v131 = vadd.f32 %v52, %v130
    %v132 = vpop.f32.mrb[0].mxu0
    %133 = vdwg.mxu0
    %v134 = vsub.f32 0.0, %v131
    %v135 = vmul.f32 %v134, 1.442695
    %v136 = vpow.pop %v135
    %v137 = vadd.f32 %v136, 1.0
    %v138 = vrcp.pop %v137
    %v139 = vmul.f32 %v131, %v138
    %v140 = vld [vmem:[%s2 + $0x1] sm:$0x1]
    %v141 = vld [vmem:[%s2 + $0x2] sm:$0x1]
    %vm142 = vcmask 254976
    %v143 = vsel %vm142, %v139, 0.0
    %144 = vadd.xlane.f32.xlu0 %v143
    %v145 = vpop.xlane.xlu0 %144
    %v146 = vrcp.pop 32.0
    %v147 = vmul.f32 %v145, %v146
    %v148 = vmul.f32 %v139, %v139
    %v149 = vsel %vm142, %v148, 0.0
    %150 = vadd.xlane.f32.xlu0 %v149
    %v151 = vpop.xlane.xlu0 %150
    %v152 = vmul.f32 %v151, %v146
    %v153 = vmul.f32 %v147, %v147
    %v154 = vsub.f32 %v152, %v153
    %v155 = vmax.f32 %v154, 0.0
    %v156 = vsub.f32 %v139, %v147
    %v157 = vadd.f32 %v155, 1e-05
    %v158 = vrsqrt.pop %v157
    %v159 = vmul.f32 %v156, %v158
    %v160 = vlaneseq
    %v161 = vshrl.u32 %v160, 7
    %v162 = vsub.s32 0, %v161
    %v163 = vrot.slane %v140, %v162
    %v164 = vmul.f32 %v159, %v163
    %v165 = vlaneseq
    %v166 = vshrl.u32 %v165, 7
    %v167 = vsub.s32 0, %v166
    %v168 = vrot.slane %v141, %v167
    %v169 = vadd.f32 %v164, %v168
    %v170 = vld [vmem:[%s1 + $0x100] sm:$0xff]
    %v171 = vld [vmem:[%s1 + $0x108] sm:$0xff]
    %v172 = vld [vmem:[%s1 + $0x110] sm:$0xff]
    %v173 = vld [vmem:[%s1 + $0x118] sm:$0xff]
    %v174 = vld [vmem:[%s2 + $0x3] sm:$0x1]
    %v175 = vlaneseq
    %v176 = vshrl.u32 %v175, 7
    %v177 = vsub.s32 0, %v176
    %v178 = vrot.slane %v174, %v177
    %vm179 = vcmask 261120
    %v181 = vsel %vm179, %v169, 0
    %183 = vmatprep.subr.mxu0 0.0
    %184 = vmatpush1.msra.mxu0 %v170
    %185 = vmatprep.subr.mxu0 0.0
    %186 = vmatpush1.msra.mxu0 %v171
    %187 = vmatprep.subr.mxu0 0.0
    %188 = vmatpush1.msra.mxu0 %v172
    %189 = vmatprep.subr.mxu0 0.0
    %190 = vmatpush1.msra.mxu0 %v173
    %191 = vmatprep.subr.mxu0 0.0
    %192 = vmatpush1.msra.mxu0 0.0
    %193 = vmatprep.subr.mxu0 0.0
    %194 = vmatpush1.msra.mxu0 0.0
    %195 = vmatprep.subr.mxu0 0.0
    %196 = vmatpush1.msra.mxu0 0.0
    %197 = vmatprep.subr.mxu0 0.0
    %198 = vmatpush1.msra.mxu0 0.0
    %199 = vmatprep.subr.mxu0 0.0
    %200 = vmatpush1.msra.mxu0 0.0
    %201 = vmatprep.subr.mxu0 0.0
    %202 = vmatpush1.msra.mxu0 0.0
    %203 = vmatprep.subr.mxu0 0.0
    %204 = vmatpush1.msra.mxu0 0.0
    %205 = vmatprep.subr.mxu0 0.0
    %206 = vmatpush1.msra.mxu0 0.0
    %207 = vmatprep.subr.mxu0 0.0
    %208 = vmatpush1.msra.mxu0 0.0
    %209 = vmatprep.subr.mxu0 0.0
    %210 = vmatpush1.msra.mxu0 0.0
    %211 = vmatprep.subr.mxu0 0.0
    %212 = vmatpush1.msra.mxu0 0.0
    %213 = vmatprep.subr.mxu0 0.0
    %214 = vmatpush1.msra.mxu0 0.0
    %215 = vmatprep.subr.mxu0 0.0
    %216 = vmatpush1.msra.mxu0 0.0
    %217 = vmatprep.subr.mxu0 0.0
    %218 = vmatpush1.msra.mxu0 0.0
    %219 = vmatprep.subr.mxu0 0.0
    %220 = vmatpush1.msra.mxu0 0.0
    %221 = vmatprep.subr.mxu0 0.0
    %222 = vmatpush1.msra.mxu0 0.0
    %223 = vmatprep.subr.mxu0 0.0
    %224 = vmatpush1.msra.mxu0 0.0
    %225 = vmatprep.subr.mxu0 0.0
    %226 = vmatpush1.msra.mxu0 0.0
    %227 = vmatprep.subr.mxu0 0.0
    %228 = vmatpush1.msra.mxu0 0.0
    %229 = vmatprep.subr.mxu0 0.0
    %230 = vmatpush1.msra.mxu0 0.0
    %231 = vmatprep.subr.mxu0 0.0
    %232 = vmatpush1.msra.mxu0 0.0
    %233 = vmatprep.subr.mxu0 0.0
    %234 = vmatpush1.msra.mxu0 0.0
    %235 = vmatprep.subr.mxu0 0.0
    %236 = vmatpush1.msra.mxu0 0.0
    %237 = vmatprep.subr.mxu0 0.0
    %238 = vmatpush1.msra.mxu0 0.0
    %239 = vmatprep.subr.mxu0 0.0
    %240 = vmatpush1.msra.mxu0 0.0
    %241 = vmatprep.subr.mxu0 0.0
    %242 = vmatpush1.msra.mxu0 0.0
    %243 = vmatprep.subr.mxu0 0.0
    %244 = vmatpush1.msra.mxu0 0.0
    %245 = vmatprep.subr.mxu0 0.0
    %246 = vmatpush1.msra.mxu0 0.0
    %247 = vmatprep.mubr.f32.mxu0 0.0
    %248 = vmatmul.mubr.f32.gmra.mrb[0].mxu0 %v181
    %v249 = vpop.f32.mrb[0].mxu0
    %v250 = vadd.f32 %v178, %v249
    %v251 = vpop.f32.mrb[0].mxu0
    %252 = vdwg.mxu0
    %v253 = vsub.f32 0.0, %v250
    %v254 = vmul.f32 %v253, 1.442695
    %v255 = vpow.pop %v254
    %v256 = vadd.f32 %v255, 1.0
    %v257 = vrcp.pop %v256
    %v258 = vmul.f32 %v250, %v257
    %v259 = vld [vmem:[%s2 + $0x4] sm:$0x1]
    %v260 = vld [vmem:[%s2 + $0x5] sm:$0x1]
    %vm261 = vcmask 123904
    %v262 = vsel %vm261, %v258, 0.0
    %263 = vadd.xlane.f32.xlu0 %v262
    %v264 = vpop.xlane.xlu0 %263
    %v265 = vrcp.pop 16.0
    %v266 = vmul.f32 %v264, %v265
    %v267 = vmul.f32 %v258, %v258
    %v268 = vsel %vm261, %v267, 0.0
    %269 = vadd.xlane.f32.xlu0 %v268
    %v270 = vpop.xlane.xlu0 %269
    %v271 = vmul.f32 %v270, %v265
    %v272 = vmul.f32 %v266, %v266
    %v273 = vsub.f32 %v271, %v272
    %v274 = vmax.f32 %v273, 0.0
    %v275 = vsub.f32 %v258, %v266
    %v276 = vadd.f32 %v274, 1e-05
    %v277 = vrsqrt.pop %v276
    %v278 = vmul.f32 %v275, %v277
    %v279 = vlaneseq
    %v280 = vshrl.u32 %v279, 7
    %v281 = vsub.s32 0, %v280
    %v282 = vrot.slane %v259, %v281
    %v283 = vmul.f32 %v278, %v282
    %v284 = vlaneseq
    %v285 = vshrl.u32 %v284, 7
    %v286 = vsub.s32 0, %v285
    %v287 = vrot.slane %v260, %v286
    %v288 = vadd.f32 %v283, %v287
    %v289 = vld [vmem:[%s1 + $0x120] sm:$0xff]
    %v290 = vld [vmem:[%s1 + $0x128] sm:$0xff]
    %v291 = vld [vmem:[%s2 + $0x6] sm:$0x1]
    %v292 = vlaneseq
    %v293 = vshrl.u32 %v292, 7
    %v294 = vsub.s32 0, %v293
    %v295 = vrot.slane %v291, %v294
    %vm296 = vcmask 130048
    %v298 = vsel %vm296, %v288, 0
    %300 = vmatprep.subr.mxu0 0.0
    %301 = vmatpush1.msra.mxu0 %v289
    %302 = vmatprep.subr.mxu0 0.0
    %303 = vmatpush1.msra.mxu0 %v290
    %304 = vmatprep.subr.mxu0 0.0
    %305 = vmatpush1.msra.mxu0 0.0
    %306 = vmatprep.subr.mxu0 0.0
    %307 = vmatpush1.msra.mxu0 0.0
    %308 = vmatprep.subr.mxu0 0.0
    %309 = vmatpush1.msra.mxu0 0.0
    %310 = vmatprep.subr.mxu0 0.0
    %311 = vmatpush1.msra.mxu0 0.0
    %312 = vmatprep.subr.mxu0 0.0
    %313 = vmatpush1.msra.mxu0 0.0
    %314 = vmatprep.subr.mxu0 0.0
    %315 = vmatpush1.msra.mxu0 0.0
    %316 = vmatprep.subr.mxu0 0.0
    %317 = vmatpush1.msra.mxu0 0.0
    %318 = vmatprep.subr.mxu0 0.0
    %319 = vmatpush1.msra.mxu0 0.0
    %320 = vmatprep.subr.mxu0 0.0
    %321 = vmatpush1.msra.mxu0 0.0
    %322 = vmatprep.subr.mxu0 0.0
    %323 = vmatpush1.msra.mxu0 0.0
    %324 = vmatprep.subr.mxu0 0.0
    %325 = vmatpush1.msra.mxu0 0.0
    %326 = vmatprep.subr.mxu0 0.0
    %327 = vmatpush1.msra.mxu0 0.0
    %328 = vmatprep.subr.mxu0 0.0
    %329 = vmatpush1.msra.mxu0 0.0
    %330 = vmatprep.subr.mxu0 0.0
    %331 = vmatpush1.msra.mxu0 0.0
    %332 = vmatprep.subr.mxu0 0.0
    %333 = vmatpush1.msra.mxu0 0.0
    %334 = vmatprep.subr.mxu0 0.0
    %335 = vmatpush1.msra.mxu0 0.0
    %336 = vmatprep.subr.mxu0 0.0
    %337 = vmatpush1.msra.mxu0 0.0
    %338 = vmatprep.subr.mxu0 0.0
    %339 = vmatpush1.msra.mxu0 0.0
    %340 = vmatprep.subr.mxu0 0.0
    %341 = vmatpush1.msra.mxu0 0.0
    %342 = vmatprep.subr.mxu0 0.0
    %343 = vmatpush1.msra.mxu0 0.0
    %344 = vmatprep.subr.mxu0 0.0
    %345 = vmatpush1.msra.mxu0 0.0
    %346 = vmatprep.subr.mxu0 0.0
    %347 = vmatpush1.msra.mxu0 0.0
    %348 = vmatprep.subr.mxu0 0.0
    %349 = vmatpush1.msra.mxu0 0.0
    %350 = vmatprep.subr.mxu0 0.0
    %351 = vmatpush1.msra.mxu0 0.0
    %352 = vmatprep.subr.mxu0 0.0
    %353 = vmatpush1.msra.mxu0 0.0
    %354 = vmatprep.subr.mxu0 0.0
    %355 = vmatpush1.msra.mxu0 0.0
    %356 = vmatprep.subr.mxu0 0.0
    %357 = vmatpush1.msra.mxu0 0.0
    %358 = vmatprep.subr.mxu0 0.0
    %359 = vmatpush1.msra.mxu0 0.0
    %360 = vmatprep.subr.mxu0 0.0
    %361 = vmatpush1.msra.mxu0 0.0
    %362 = vmatprep.subr.mxu0 0.0
    %363 = vmatpush1.msra.mxu0 0.0
    %364 = vmatprep.mubr.f32.mxu0 0.0
    %365 = vmatmul.mubr.f32.gmra.mrb[0].mxu0 %v298
    %v366 = vpop.f32.mrb[0].mxu0
    %v367 = vadd.f32 %v295, %v366
    %v368 = vpop.f32.mrb[0].mxu0
    %369 = vdwg.mxu0
    %v370 = vsub.f32 0.0, %v367
    %v371 = vmul.f32 %v370, 1.442695
    %v372 = vpow.pop %v371
    %v373 = vadd.f32 %v372, 1.0
    %v374 = vrcp.pop %v373
    %v375 = vmul.f32 10.0, %v374
    %v376 = vadd.f32 %v375, 90.0
    %vm377 = vcmp.gt.f32.partialorder %v367, 20.0
    %v378 = vmin.f32 %v367, 20.0
    %v379 = vmul.f32 %v378, 1.442695
    %v380 = vpow.pop %v379
    %v381 = vadd.f32 %v380, 1.0
    %v382 = vlog2.pop %v381
    %v383 = vmul.f32 %v382, 0.6931472
    %v384 = vmul.f32 -0.5, %v380
    %v385 = vadd.f32 %v384, 1.0
    %v386 = vmul.f32 %v385, %v380
    %v387 = vand.u32 2147483647, %v380
    %vm388 = vcmp.lt.f32.partialorder %v387, 0.0004427343
    %v389 = vsel %vm388, %v386, %v383
    %v390 = vsel %vm377, %v367, %v389
    %v391 = vlaneseq
    %v392 = vand.u32 %v391, 127
    %vm393 = vcmp.eq.s32.totalorder %v392, 0
    %v394 = vsel %vm393, %v376, %v390
    %vm395 = vcmask 9216
    %396 = vst.msk [vmem:[#allocation2] sm:$0x3] %vm395, %v394
    // Predicated region
    $region14: #{tpu_custom_call.1} parent=1 // pred_check
      _
    $region15: #{tpu_custom_call.1} parent=1 // pred_check_branch
      %398 = sbr.rel (0) target = $region17
    $region16: #{tpu_custom_call.1} parent=1 // pred_region
      %s400 = ssub.s32 32, 32
      %401 = vsyncadd [#allocation3], %s400
      %s403 = sshll.u32 [#allocation2], 4
      %s404 = int_to_ptr.vmem [resolvable:$true] %s403
      %406 = dma.vmem_to_hbm [thread:$0]  %s404, 32, %s3, [#allocation3]
    $region17: #{tpu_custom_call.1} parent=1 // pred_fallthru
      _
    // Predicated region
    $region18: #{tpu_custom_call.1} parent=1 // pred_check
      _
    $region19: #{tpu_custom_call.1} parent=1 // pred_check_branch
      %408 = sbr.rel (0) target = $region21
    $region20: #{tpu_custom_call.1} parent=1 // pred_region
      %409 = dma.done [#allocation3], 32
    $region21: #{tpu_custom_call.1} parent=1 // pred_fallthru
      _
    %410 = vsyncpa [#allocation3], 1

</llo_original>
